<compile_context>
chip_gen: v6e
topology: v6e:2x2x1
jax: 0.10.0
libtpu: 0.0.40
codegen_flags: <defaults>
</compile_context>

<pallas_src>
import functools

import jax
import jax.numpy as jnp
from jax import lax
from jax.experimental import pallas as pl
from jax.experimental.pallas import tpu as pltpu


# ---------------------------------------------------------------------------
# Fused qkv-projection + multi-head attention kernel (one batch element / step)
# ---------------------------------------------------------------------------
def _head_attention(qkv_h, head_dim, scale):
    """qkv_h: (N, 3*hd) f32 for one head -> (hd, N) f32 attention output."""
    q = qkv_h[:, 0:head_dim]
    k = qkv_h[:, head_dim:2 * head_dim]
    v = qkv_h[:, 2 * head_dim:3 * head_dim]
    # scores q @ k^T without materializing k^T: contract the hd axis of both.
    s = lax.dot_general(q, k, (((1,), (1,)), ((), ())),
                        preferred_element_type=jnp.float32) * scale   # (N, N)
    s = s - jnp.max(s, axis=-1, keepdims=True)
    p = jnp.exp(s)
    p = p / jnp.sum(p, axis=-1, keepdims=True)          # exact normalization
    # PV with M = N rows on the MXU; transpose of the tiny (N, hd) result is XLU.
    o_h = jnp.dot(p, v, preferred_element_type=jnp.float32)           # (N, hd)
    return o_h.T                                                      # (hd, N)


def _lowmixer_kernel(x_ref, w_ref, o_ref, *, num_heads, head_dim, scale):
    """x_ref: (1, N, C) bf16; w_ref: (heads, C, 3*hd) bf16; o_ref: (1, C, N) f32."""
    x = x_ref[0]                                         # (N, C) bf16

    def head_body(h, carry):
        w_h = w_ref[h]                                   # (C, 3*hd) bf16
        qkv_h = jnp.dot(x, w_h, preferred_element_type=jnp.float32)   # (N, 3*hd)
        o_t = _head_attention(qkv_h, head_dim, scale)    # (hd, N)
        row = pl.multiple_of(h * head_dim, head_dim)
        o_ref[0, pl.ds(row, head_dim), :] = o_t          # torch channel = h*hd + d
        return carry

    lax.fori_loop(0, num_heads, head_body, 0)


def _lowmixer_bias_kernel(x_ref, w_ref, b_ref, o_ref, *, num_heads, head_dim, scale):
    """Same as _lowmixer_kernel with a per-head qkv bias b_ref: (heads, 1, 3*hd) f32."""
    x = x_ref[0]

    def head_body(h, carry):
        w_h = w_ref[h]
        b_h = b_ref[h]                                   # (1, 3*hd) f32
        qkv_h = jnp.dot(x, w_h, preferred_element_type=jnp.float32) + b_h
        o_t = _head_attention(qkv_h, head_dim, scale)
        row = pl.multiple_of(h * head_dim, head_dim)
        o_ref[0, pl.ds(row, head_dim), :] = o_t
        return carry

    lax.fori_loop(0, num_heads, head_body, 0)


# ---------------------------------------------------------------------------
# LowMixer forward (layout glue in plain JAX, all compute in the fused kernel)
# ---------------------------------------------------------------------------
def lowmixer_forward(x, qkv_w, qkv_b=None, *, num_heads=8, pool_size=2):
    """x: (B, dim, H, W) NCHW -> (B, dim, Hp*pool, Wp*pool) (== H, W when divisible)."""
    B, C, H, W = x.shape
    hd = C // num_heads
    scale = float(hd) ** (-0.5)

    # AvgPool2d(pool, stride=pool, padding=0): floor-crop remainder like torch.
    if pool_size > 1:
        Hp, Wp = H // pool_size, W // pool_size
        xc = x[:, :, :Hp * pool_size, :Wp * pool_size]
        xp = xc.reshape(B, C, Hp, pool_size, Wp, pool_size).mean(axis=(3, 5))
    else:
        Hp, Wp = H, W
        xp = x
    N = Hp * Wp

    # tokens (B, N, C), pre-cast to bf16 (fuses into the transpose in XLA).
    tokens = jnp.transpose(xp, (0, 2, 3, 1)).reshape(B, N, C).astype(jnp.bfloat16)

    # Per-head weight layout (heads, C, 3*hd); column j = slot*hd + d, slot in {q,k,v}.
    # torch qkv columns are ordered [slot, head, d] = slot*C + h*hd + d.
    w_heads = (qkv_w.reshape(C, 3, num_heads, hd)
               .transpose(2, 0, 1, 3)
               .reshape(num_heads, C, 3 * hd)
               .astype(jnp.bfloat16))

    kernel_kwargs = dict(num_heads=num_heads, head_dim=hd, scale=scale)
    cparams = pltpu.CompilerParams(
        dimension_semantics=("parallel",),        # B >= 2 keeps both v7x TCs busy
        vmem_limit_bytes=32 * 1024 * 1024,        # conservative for v7x's 64 MiB VMEM
    )
    x_spec = pl.BlockSpec((1, N, C), lambda b: (b, 0, 0))
    w_spec = pl.BlockSpec((num_heads, C, 3 * hd), lambda b: (0, 0, 0))   # resident
    o_spec = pl.BlockSpec((1, C, N), lambda b: (b, 0, 0))
    out_shape = jax.ShapeDtypeStruct((B, C, N), jnp.float32)

    if qkv_b is None:
        out_cn = pl.pallas_call(
            functools.partial(_lowmixer_kernel, **kernel_kwargs),
            out_shape=out_shape,
            grid=(B,),
            in_specs=[x_spec, w_spec],
            out_specs=o_spec,
            compiler_params=cparams,
        )(tokens, w_heads)
    else:
        b_heads = (qkv_b.reshape(3, num_heads, hd)
                   .transpose(1, 0, 2)
                   .reshape(num_heads, 1, 3 * hd)
                   .astype(jnp.float32))
        b_spec = pl.BlockSpec((num_heads, 1, 3 * hd), lambda b: (0, 0, 0))
        out_cn = pl.pallas_call(
            functools.partial(_lowmixer_bias_kernel, **kernel_kwargs),
            out_shape=out_shape,
            grid=(B,),
            in_specs=[x_spec, w_spec, b_spec],
            out_specs=o_spec,
            compiler_params=cparams,
        )(tokens, w_heads, b_heads)

    xa = out_cn.reshape(B, C, Hp, Wp)
    if pool_size > 1:
        # nearest Upsample(scale_factor=pool_size) via one broadcast (no double repeat)
        xa = jnp.broadcast_to(
            xa.reshape(B, C, Hp, 1, Wp, 1),
            (B, C, Hp, pool_size, Wp, pool_size),
        ).reshape(B, C, Hp * pool_size, Wp * pool_size)
    return xa


# ---------------------------------------------------------------------------
# Pure-JAX f32 reference (mirrors the torch module exactly)
# ---------------------------------------------------------------------------
def lowmixer_reference(x, qkv_w, qkv_b=None, *, num_heads=8, pool_size=2):
    B, C, H, W = x.shape
    hd = C // num_heads
    scale = float(hd) ** (-0.5)
    if pool_size > 1:
        Hp, Wp = H // pool_size, W // pool_size
        xc = x[:, :, :Hp * pool_size, :Wp * pool_size]
        xp = xc.reshape(B, C, Hp, pool_size, Wp, pool_size).mean(axis=(3, 5))
    else:
        Hp, Wp = H, W
        xp = x
    N = Hp * Wp
    tok = jnp.transpose(xp, (0, 2, 3, 1)).reshape(B, N, C)
    qkv = tok @ qkv_w
    if qkv_b is not None:
        qkv = qkv + qkv_b
    qkv = qkv.reshape(B, N, 3, num_heads, hd).transpose(2, 0, 3, 1, 4)
    q, k, v = qkv[0], qkv[1], qkv[2]
    s = jnp.einsum('bhqd,bhkd->bhqk', q, k) * scale
    p = jax.nn.softmax(s, axis=-1)
    o = jnp.einsum('bhqk,bhkd->bhqd', p, v)
    o = jnp.transpose(o, (0, 1, 3, 2)).reshape(B, C, Hp, Wp)
    if pool_size > 1:
        o = jnp.broadcast_to(
            o.reshape(B, C, Hp, 1, Wp, 1),
            (B, C, Hp, pool_size, Wp, pool_size),
        ).reshape(B, C, Hp * pool_size, Wp * pool_size)
    return o


# ---------------------------------------------------------------------------
if __name__ == "__main__":
    B, dim, H, W = 2, 64, 16, 16
    num_heads = 8                       # torch default
    pool_size = 2                       # torch default

    key = jax.random.PRNGKey(0)
    kx, kw = jax.random.split(key)
    x = jax.random.normal(kx, (B, dim, H, W), jnp.float32)
    # torch Linear(dim, 3*dim, bias=False) weight is (3*dim, dim); we store W^T
    qkv_w = jax.random.normal(kw, (dim, 3 * dim), jnp.float32) * (dim ** -0.5)
    qkv_b = None                        # qkv_bias=False (default)

    fwd = jax.jit(functools.partial(lowmixer_forward,
                                    num_heads=num_heads, pool_size=pool_size))
    out = jax.block_until_ready(fwd(x, qkv_w, qkv_b))

    ref = lowmixer_reference(x, qkv_w, qkv_b,
                             num_heads=num_heads, pool_size=pool_size)

    assert out.shape == (B, dim, H, W)
    assert bool(jnp.all(jnp.isfinite(out)))
    max_err = float(jnp.max(jnp.abs(out - jnp.asarray(ref, jnp.float32))))
    # bf16 MXU operands for the qkv projection (f32 accumulate, f32 attention)
    assert max_err < 5e-2, f"max abs err vs f32 reference = {max_err}"
    print("KERNEL_OK")
</pallas_src>

<mosaic_0001>
module attributes {stable_mosaic.version = 11 : i64} {
  func.func @_lowmixer_kernel(%arg0: i32, %arg1: memref<1x64x64xbf16, #tpu.memory_space<vmem>>, %arg2: memref<8x64x24xbf16, #tpu.memory_space<vmem>>, %arg3: memref<1x64x64xf32, #tpu.memory_space<vmem>>) attributes {dimension_semantics = [#tpu.dimension_semantics<parallel>], iteration_bounds = array<i64: 2>, scalar_prefetch = 0 : i64, scratch_operands = 0 : i64, tpu.core_type = #tpu.core_type<tc>, window_params = [{transform_indices = @transform_0, window_bounds = array<i64: 1, 64, 64>}, {pipeline_mode = #tpu.pipeline_mode<synchronous>, transform_indices = @transform_1, window_bounds = array<i64: 8, 64, 24>}, {transform_indices = @transform_2, window_bounds = array<i64: 1, 64, 64>}]} {
    %c0 = arith.constant 0 : index
    %c0_0 = arith.constant 0 : index
    %c0_1 = arith.constant 0 : index
    %0 = vector.load %arg1[%c0, %c0_0, %c0_1] : memref<1x64x64xbf16, #tpu.memory_space<vmem>>, vector<1x64x64xbf16>
    %1 = vector.shape_cast %0 : vector<1x64x64xbf16> to vector<64x64xbf16>
    %c0_i32 = arith.constant 0 : i32
    %c8_i32 = arith.constant 8 : i32
    %2 = arith.addi %c0_i32, %c8_i32 : i32
    %c1_i32 = arith.constant 1 : i32
    scf.for %arg4 = %c0_i32 to %2 step %c1_i32  : i32 {
      %3 = arith.index_cast %arg4 : i32 to index
      %c0_3 = arith.constant 0 : index
      %c0_4 = arith.constant 0 : index
      %4 = vector.load %arg2[%3, %c0_3, %c0_4] : memref<8x64x24xbf16, #tpu.memory_space<vmem>>, vector<1x64x24xbf16>
      %5 = vector.shape_cast %4 : vector<1x64x24xbf16> to vector<64x24xbf16>
      %cst = arith.constant dense<0.000000e+00> : vector<64x24xf32>
      %6 = tpu.matmul %1, %5, %cst {dimension_numbers = #tpu.dot_dimension_numbers<[1], [0], [0], [1], [0, 0, 1, 1], [], []>} : vector<64x64xbf16>, vector<64x24xbf16>, vector<64x24xf32> -> vector<64x24xf32>
      %7 = vector.extract_strided_slice %6 {offsets = [0, 0], sizes = [64, 8], strides = [1, 1]} : vector<64x24xf32> to vector<64x8xf32>
      %8 = vector.extract_strided_slice %6 {offsets = [0, 8], sizes = [64, 8], strides = [1, 1]} : vector<64x24xf32> to vector<64x8xf32>
      %9 = vector.extract_strided_slice %6 {offsets = [0, 16], sizes = [64, 8], strides = [1, 1]} : vector<64x24xf32> to vector<64x8xf32>
      %cst_5 = arith.constant dense<0.000000e+00> : vector<64x64xf32>
      %10 = tpu.matmul %7, %8, %cst_5 {dimension_numbers = #tpu.dot_dimension_numbers<[1], [1], [0], [0], [0, 0, 1, 0], [], []>} : vector<64x8xf32>, vector<64x8xf32>, vector<64x64xf32> -> vector<64x64xf32>
      %cst_6 = arith.constant 0.353553385 : f32
      %11 = vector.broadcast %cst_6 : f32 to vector<64x64xf32>
      %12 = arith.mulf %10, %11 : vector<64x64xf32>
      %cst_7 = arith.constant dense<0xFF800000> : vector<64xf32>
      %13 = vector.multi_reduction <maximumf>, %12, %cst_7 [1] : vector<64x64xf32> to vector<64xf32>
      %14 = vector.shape_cast %13 : vector<64xf32> to vector<64x1xf32>
      %15 = vector.broadcast %14 : vector<64x1xf32> to vector<64x64xf32>
      %16 = arith.subf %12, %15 : vector<64x64xf32>
      %17 = math.exp %16 : vector<64x64xf32>
      %cst_8 = arith.constant dense<0.000000e+00> : vector<64xf32>
      %18 = vector.multi_reduction <add>, %17, %cst_8 [1] : vector<64x64xf32> to vector<64xf32>
      %19 = vector.shape_cast %18 : vector<64xf32> to vector<64x1xf32>
      %20 = vector.broadcast %19 : vector<64x1xf32> to vector<64x64xf32>
      %21 = arith.divf %17, %20 : vector<64x64xf32>
      %cst_9 = arith.constant dense<0.000000e+00> : vector<64x8xf32>
      %22 = tpu.matmul %21, %9, %cst_9 {dimension_numbers = #tpu.dot_dimension_numbers<[1], [0], [0], [1], [0, 0, 1, 1], [], []>} : vector<64x64xf32>, vector<64x8xf32>, vector<64x8xf32> -> vector<64x8xf32>
      %23 = tpu.transpose %22, [1, 0] : vector<64x8xf32> -> vector<8x64xf32>
      %c8_i32_10 = arith.constant 8 : i32
      %24 = arith.muli %arg4, %c8_i32_10 : i32
      %25 = tpu.assume_multiple %24, 8 : i32
      %c0_11 = arith.constant 0 : index
      %26 = arith.index_cast %25 : i32 to index
      %c0_12 = arith.constant 0 : index
      %27 = vector.load %arg3[%c0_11, %26, %c0_12] : memref<1x64x64xf32, #tpu.memory_space<vmem>>, vector<1x8x64xf32>
      %28 = vector.shape_cast %27 : vector<1x8x64xf32> to vector<8x64xf32>
      %29 = vector.shape_cast %23 : vector<8x64xf32> to vector<1x8x64xf32>
      tpu.vector_store %arg3[%c0_11, %26, %c0_12], %29 {strides = array<i32>} : memref<1x64x64xf32, #tpu.memory_space<vmem>>, vector<1x8x64xf32>,
    }
    %c8_i32_2 = arith.constant 8 : i32
    return
  }
  func.func @transform_0(%arg0: i32) -> (i32, i32, i32) {
    %c0_i32 = arith.constant 0 : i32
    %c0_i32_0 = arith.constant 0 : i32
    %c0_i32_1 = arith.constant 0 : i32
    return %arg0, %c0_i32, %c0_i32_0 : i32, i32, i32
  }
  func.func @transform_1(%arg0: i32) -> (i32, i32, i32) {
    %c0_i32 = arith.constant 0 : i32
    %c0_i32_0 = arith.constant 0 : i32
    %c0_i32_1 = arith.constant 0 : i32
    %c0_i32_2 = arith.constant 0 : i32
    return %c0_i32, %c0_i32_0, %c0_i32_1 : i32, i32, i32
  }
  func.func @transform_2(%arg0: i32) -> (i32, i32, i32) {
    %c0_i32 = arith.constant 0 : i32
    %c0_i32_0 = arith.constant 0 : i32
    %c0_i32_1 = arith.constant 0 : i32
    return %arg0, %c0_i32, %c0_i32_0 : i32, i32, i32
  }
}

</mosaic_0001>

<llo_original>
// kernel: lowmixer_forward.1
$region0: #{lowmixer_forward.1}
  #allocation0 [shape = 'u32[]', space=smem, size = 0x4, offset = 0x4, fixed_abs, tag = 'smem constant byte address 0x4 - core index']
  #allocation1 [shape = 'u32[144,128]{1,0:T(1,128)}', space=vmem, size = 0x12000, scoped, tag = 'internal scratch']
  %s0 = inlined_call_operand.vmem [shape: bf16[2,64,64], index: 0, kind: input, shape index: {}]
  %s1 = inlined_call_operand.vmem [shape: bf16[8,64,24], index: 1, kind: input, shape index: {}]
  %s2 = inlined_call_operand.vmem [shape: f32[2,64,64], index: 2, kind: output, shape index: {}]
  %s3 = sld [smem:[#allocation0]]
  $region48: #{lowmixer_forward.1} parent=0
    _
  %s5 = ssub.s32 1, %s3
  %s6 = scalar_select 0, %s5, %s3
  loop: start=0, step=1, limit=4
  $region2: #{lowmixer_forward.1} parent=0 // loop_pre_header
    _
  $region3: #{lowmixer_forward.1} parent=0 // loop_header
    %s8 = sphi 0, %s12
    %p9 = scmp.ge.s32.totalorder %s8, 4
    %s18 = sphi 0, %s20
    %s21 = sphi 0, %s18
    %s22 = sphi 0, %s21
    %s38 = sphi 0, %s22
    %s42 = sphi 0, %s42
    %s44 = sphi 0, %s42
    %s45 = sphi 0, %s44
    %s59 = sphi 0, %s45
    %s65 = sphi 0, %s67
    %s68 = sphi 0, %s65
    %s69 = sphi 0, %s68
    %s85 = sphi 0, %s69
  $region4: #{lowmixer_forward.1} parent=0 // loop_header_branch
    %11 = sbr.rel (%p9) target = $region8
  $region5: #{lowmixer_forward.1} parent=0 // loop_body
    %s13 = ssub.s32 %s8, 1
    %s14 = ssub.s32 %s8, 2
    %s15 = sadd.s32 %s8, 1
    %s16 = ssub.s32 %s8, %s15
    %p17 = scmp.eq.s32.totalorder %s16, 0
    %s19 = sadd.s32 %s18, 1
    %s20 = scalar_select %p17, %s18, %s19
    %p23 = pneg %p17
    %p24 = scmp.eq.s32.totalorder %s8, 1
    %p25 = por %p23, %p24
    %p26 = scmp.ne.s32.totalorder %s18, %s21
    %p27 = scmp.eq.s32.totalorder %s8, 0
    %p28 = por %p26, %p27
    %p29 = scmp.ne.s32.totalorder %s18, %s21
    %p30 = scmp.eq.s32.totalorder %s13, 1
    %p31 = por %p29, %p30
    %p32 = scmp.ne.s32.totalorder %s21, %s22
    %p33 = scmp.eq.s32.totalorder %s13, 0
    %p34 = por %p32, %p33
    %p35 = scmp.ne.s32.totalorder %s21, %s22
    %p36 = scmp.eq.s32.totalorder %s14, 1
    %p37 = por %p35, %p36
    %p39 = scmp.ne.s32.totalorder %s22, %s38
    %p40 = scmp.eq.s32.totalorder %s14, 0
    %p41 = por %p39, %p40
    %s43 = sadd.s32 %s42, 1
    %p46 = scmp.eq.s32.totalorder %s8, 1
    %p47 = scmp.ne.s32.totalorder %s42, %s44
    %p48 = scmp.eq.s32.totalorder %s8, 0
    %p49 = por %p47, %p48
    %p50 = scmp.ne.s32.totalorder %s42, %s44
    %p51 = scmp.eq.s32.totalorder %s13, 1
    %p52 = por %p50, %p51
    %p53 = scmp.ne.s32.totalorder %s44, %s45
    %p54 = scmp.eq.s32.totalorder %s13, 0
    %p55 = por %p53, %p54
    %p56 = scmp.ne.s32.totalorder %s44, %s45
    %p57 = scmp.eq.s32.totalorder %s14, 1
    %p58 = por %p56, %p57
    %p60 = scmp.ne.s32.totalorder %s45, %s59
    %p61 = scmp.eq.s32.totalorder %s14, 0
    %p62 = por %p60, %p61
    %s63 = ssub.s32 %s8, %s15
    %p64 = scmp.eq.s32.totalorder %s63, 0
    %s66 = sadd.s32 %s65, 1
    %s67 = scalar_select %p64, %s65, %s66
    %p70 = pneg %p64
    %p71 = scmp.eq.s32.totalorder %s8, 1
    %p72 = por %p70, %p71
    %p73 = scmp.ne.s32.totalorder %s65, %s68
    %p74 = scmp.eq.s32.totalorder %s8, 0
    %p75 = por %p73, %p74
    %p76 = scmp.ne.s32.totalorder %s65, %s68
    %p77 = scmp.eq.s32.totalorder %s13, 1
    %p78 = por %p76, %p77
    %p79 = scmp.ne.s32.totalorder %s68, %s69
    %p80 = scmp.eq.s32.totalorder %s13, 0
    %p81 = por %p79, %p80
    %p82 = scmp.ne.s32.totalorder %s68, %s69
    %p83 = scmp.eq.s32.totalorder %s14, 1
    %p84 = por %p82, %p83
    %p86 = scmp.ne.s32.totalorder %s69, %s85
    %p87 = scmp.eq.s32.totalorder %s14, 0
    %p88 = por %p86, %p87
    %p89 = scmp.le.s32.totalorder 1, %s8
    %p90 = scmp.lt.s32.totalorder %s8, 3
    %p91 = pnand %p89, %p90
    %p92 = pneg %p91
    // Predicated region
    $region9: #{lowmixer_forward.1} parent=5 // pred_check
      _
    $region10: #{lowmixer_forward.1} parent=5 // pred_check_branch
      %94 = sbr.rel (%p91) target = $region12
    $region11: #{lowmixer_forward.1} parent=5 // pred_region
      %s95 = ssub.s32 %s8, 1
      // Predicated region
      $region13: #{lowmixer_forward.1} parent=11 // pred_check
        %p96 = pneg %p55
      $region14: #{lowmixer_forward.1} parent=11 // pred_check_branch
        %98 = sbr.rel (%p96) target = $region16
      $region15: #{lowmixer_forward.1} parent=11 // pred_region
        _
      $region16: #{lowmixer_forward.1} parent=11 // pred_fallthru
        _
    $region12: #{lowmixer_forward.1} parent=5 // pred_fallthru
      _
    %p99 = scmp.lt.s32.totalorder %s8, 2
    // Predicated region
    $region17: #{lowmixer_forward.1} parent=5 // pred_check
      %p100 = pneg %p99
    $region18: #{lowmixer_forward.1} parent=5 // pred_check_branch
      %102 = sbr.rel (%p100) target = $region20
    $region19: #{lowmixer_forward.1} parent=5 // pred_region
      // Predicated region
      $region21: #{lowmixer_forward.1} parent=19 // pred_check
        %p103 = pneg %p28
      $region22: #{lowmixer_forward.1} parent=19 // pred_check_branch
        %105 = sbr.rel (%p103) target = $region24
      $region23: #{lowmixer_forward.1} parent=19 // pred_region
        %p106 = scmp.lt.s32.totalorder %s8, 1
        %s107 = scalar_select %p106, %s8, 1
        %s108 = smul.addr %s107, 8
        %s109 = smul.addr %s108, 4
        %s110 = scalar_lea.vmem %s0, %s109
      $region24: #{lowmixer_forward.1} parent=19 // pred_fallthru
        _
    $region20: #{lowmixer_forward.1} parent=5 // pred_fallthru
      _
    %p111 = scmp.le.s32.totalorder 1, %s8
    %p112 = scmp.lt.s32.totalorder %s8, 3
    %p113 = pnand %p111, %p112
    %p114 = pneg %p113
    // Predicated region
    $region25: #{lowmixer_forward.1} parent=5 // pred_check
      _
    $region26: #{lowmixer_forward.1} parent=5 // pred_check_branch
      %116 = sbr.rel (%p113) target = $region28
    $region27: #{lowmixer_forward.1} parent=5 // pred_region
      %s117 = ssub.s32 %s8, 1
      %p118 = scmp.lt.s32.totalorder %s13, 1
      %s119 = scalar_select %p118, %s13, 1
      %s120 = smul.addr %s119, 8
      %s121 = smul.addr %s120, 4
      %s122 = scalar_lea.vmem %s0, %s121
      %p123 = pneg %p34
      %p124 = pneg %p31
      %p125 = pneg %p55
      %p126 = pneg %p52
      %p127 = pneg %p81
      %p128 = pneg %p78
      %p129 = scmp.lt.s32.totalorder %s13, 1
      %s130 = scalar_select %p129, %s13, 1
      %s131 = smul.addr %s130, 8
      %s132 = smul.addr %s131, 8
      %s133 = scalar_lea.vmem %s2, %s132
      %p134 = scmp.lt.s32.totalorder %s13, 1
      %s135 = scalar_select %p134, %s13, 1
      %s136 = smul.addr %s135, 8
      %s137 = smul.addr %s136, 4
      %s138 = scalar_lea.vmem %s0, %s137
      %p139 = scmp.lt.s32.totalorder %s13, 1
      %s140 = scalar_select %p139, %s13, 1
      %s141 = smul.addr %s140, 8
      %s142 = smul.addr %s141, 8
      %s143 = scalar_lea.vmem %s2, %s142
      %v145 = vld [vmem:[%s138] sm:$0xf]
      %v146 = vld [vmem:[%s138 + $0x4] sm:$0xf]
      %v147 = vld [vmem:[%s138 + $0x8] sm:$0xf]
      %v148 = vld [vmem:[%s138 + $0xc] sm:$0xf]
      %v149 = vld [vmem:[%s138 + $0x10] sm:$0xf]
      %v150 = vld [vmem:[%s138 + $0x14] sm:$0xf]
      %v151 = vld [vmem:[%s138 + $0x18] sm:$0xf]
      %v152 = vld [vmem:[%s138 + $0x1c] sm:$0xf]
      loop: start=0, step=1, limit=8
      $region29: #{lowmixer_forward.1} parent=27 // loop_pre_header
        _
      $region30: #{lowmixer_forward.1} parent=27 // loop_header
        %s154 = sphi 0, %s158
        %p155 = scmp.ge.s32.totalorder %s154, 8
      $region31: #{lowmixer_forward.1} parent=27 // loop_header_branch
        %157 = sbr.rel (%p155) target = $region35
      $region32: #{lowmixer_forward.1} parent=27 // loop_body
        %s159 = smul.u32 %s154, 8
        %s160 = smul.addr %s159, 4
        %s161 = scalar_lea.vmem %s1, %s160
        %v162 = vld [vmem:[%s161] sm:$0xf]
        %v163 = vld [vmem:[%s161 + $0x4] sm:$0xf]
        %v164 = vld [vmem:[%s161 + $0x8] sm:$0xf]
        %v165 = vld [vmem:[%s161 + $0xc] sm:$0xf]
        %v166 = vld [vmem:[%s161 + $0x10] sm:$0xf]
        %v167 = vld [vmem:[%s161 + $0x14] sm:$0xf]
        %v168 = vld [vmem:[%s161 + $0x18] sm:$0xf]
        %v169 = vld [vmem:[%s161 + $0x1c] sm:$0xf]
        %v178 = vunpack.c.l.b16 %v145
        %v179 = vunpack.c.l.b16 %v146
        %v180 = vunpack.c.l.b16 %v147
        %v181 = vunpack.c.l.b16 %v148
        %v182 = vunpack.c.l.b16 %v149
        %v183 = vunpack.c.l.b16 %v150
        %v184 = vunpack.c.l.b16 %v151
        %v185 = vunpack.c.l.b16 %v152
        %v186 = vpack.c.b16 %v179, %v178
        %v187 = vpack.c.b16 %v181, %v180
        %v188 = vpack.c.b16 %v183, %v182
        %v189 = vpack.c.b16 %v185, %v184
        %v198 = vunpack.c.l.b16 %v162
        %v199 = vunpack.c.l.b16 %v163
        %v200 = vunpack.c.l.b16 %v164
        %v201 = vunpack.c.l.b16 %v165
        %v202 = vunpack.c.l.b16 %v166
        %v203 = vunpack.c.l.b16 %v167
        %v204 = vunpack.c.l.b16 %v168
        %v205 = vunpack.c.l.b16 %v169
        %v206 = vpack.c.b16 %v199, %v198
        %v207 = vpack.c.b16 %v201, %v200
        %v208 = vpack.c.b16 %v203, %v202
        %v209 = vpack.c.b16 %v205, %v204
        %vm214 = vcmask 523264
        %v216 = vsel %vm214, %v186, 0
        %v219 = vsel %vm214, %v187, 0
        %v222 = vsel %vm214, %v188, 0
        %v225 = vsel %vm214, %v189, 0
        %227 = vmatprep.subr.bf16.mxu0 0
        %228 = vmatpush1.bf16.msra.mxu0 0
        %229 = vmatprep.subr.bf16.mxu0 0
        %230 = vmatpush1.bf16.msra.mxu0 0
        %231 = vmatprep.subr.bf16.mxu0 0
        %232 = vmatpush1.bf16.msra.mxu0 0
        %233 = vmatprep.subr.bf16.mxu0 0
        %234 = vmatpush1.bf16.msra.mxu0 0
        %235 = vmatprep.subr.bf16.mxu0 0
        %236 = vmatpush1.bf16.msra.mxu0 %v209
        %237 = vmatprep.subr.bf16.mxu0 0
        %238 = vmatpush1.bf16.msra.mxu0 %v208
        %239 = vmatprep.subr.bf16.mxu0 0
        %240 = vmatpush1.bf16.msra.mxu0 %v207
        %241 = vmatprep.subr.bf16.mxu0 0
        %242 = vmatpush1.bf16.msra.mxu0 %v206
        %243 = vmatprep.subr.bf16.mxu0 0
        %244 = vmatpush2.bf16.msra.mxu0 0
        %245 = vmatprep.subr.bf16.mxu0 0
        %246 = vmatpush2.bf16.msra.mxu0 0
        %247 = vmatprep.subr.bf16.mxu0 0
        %248 = vmatpush2.bf16.msra.mxu0 0
        %249 = vmatprep.subr.bf16.mxu0 0
        %250 = vmatpush2.bf16.msra.mxu0 0
        %251 = vmatprep.subr.bf16.mxu0 0
        %252 = vmatpush2.bf16.msra.mxu0 0
        %253 = vmatprep.subr.bf16.mxu0 0
        %254 = vmatpush2.bf16.msra.mxu0 0
        %255 = vmatprep.subr.bf16.mxu0 0
        %256 = vmatpush2.bf16.msra.mxu0 0
        %257 = vmatprep.subr.bf16.mxu0 0
        %258 = vmatpush2.bf16.msra.mxu0 0
        %259 = vmatprep.mubr.bf16.mxu0 0
        %260 = vmatmul.mubr.bf16.gmra.mxu0 %v216
        %v261 = vpop.f32.mrf.mxu0
        %v262 = vadd.f32 0.0, %v261
        %v263 = vpop.f32.mrf.mxu0
        %v264 = vpop.f32.mrf.mxu0
        %v265 = vadd.f32 0.0, %v264
        %v266 = vpop.f32.mrf.mxu0
        %267 = vmatprep.mubr.bf16.mxu0 0
        %268 = vmatmul.mubr.bf16.gmra.mxu0 %v219
        %v269 = vpop.f32.mrf.mxu0
        %v270 = vadd.f32 0.0, %v269
        %v271 = vpop.f32.mrf.mxu0
        %v272 = vpop.f32.mrf.mxu0
        %v273 = vadd.f32 0.0, %v272
        %v274 = vpop.f32.mrf.mxu0
        %275 = vmatprep.mubr.bf16.mxu0 0
        %276 = vmatmul.mubr.bf16.gmra.mxu0 %v222
        %v277 = vpop.f32.mrf.mxu0
        %v278 = vadd.f32 0.0, %v277
        %v279 = vpop.f32.mrf.mxu0
        %v280 = vpop.f32.mrf.mxu0
        %v281 = vadd.f32 0.0, %v280
        %v282 = vpop.f32.mrf.mxu0
        %283 = vmatprep.mubr.bf16.mxu0 0
        %284 = vmatmul.mubr.bf16.gmra.mxu0 %v225
        %v285 = vpop.f32.mrf.mxu0
        %v286 = vadd.f32 0.0, %v285
        %v287 = vpop.f32.mrf.mxu0
        %v288 = vpop.f32.mrf.mxu0
        %v289 = vadd.f32 0.0, %v288
        %v290 = vpop.f32.mrf.mxu0
        %291 = vdwg.mxu0
        %300 = vrot.lane.b32.xlu0 %v262, 120
        %v301 = vpop.permute.xlu0 %300
        %302 = vrot.lane.b32.xlu0 %v265, 120
        %v303 = vpop.permute.xlu0 %302
        %304 = vrot.lane.b32.xlu0 %v270, 120
        %v305 = vpop.permute.xlu0 %304
        %306 = vrot.lane.b32.xlu0 %v273, 120
        %v307 = vpop.permute.xlu0 %306
        %308 = vrot.lane.b32.xlu0 %v278, 120
        %v309 = vpop.permute.xlu0 %308
        %310 = vrot.lane.b32.xlu0 %v281, 120
        %v311 = vpop.permute.xlu0 %310
        %312 = vrot.lane.b32.xlu0 %v286, 120
        %v313 = vpop.permute.xlu0 %312
        %314 = vrot.lane.b32.xlu0 %v289, 120
        %v315 = vpop.permute.xlu0 %314
        %vm316 = vcmask 64512
        %v317 = vsel %vm316, %v262, 0
        %v319 = vsel %vm316, %v265, 0
        %v321 = vsel %vm316, %v270, 0
        %v323 = vsel %vm316, %v273, 0
        %v325 = vsel %vm316, %v278, 0
        %v327 = vsel %vm316, %v281, 0
        %v329 = vsel %vm316, %v286, 0
        %v331 = vsel %vm316, %v289, 0
        %v333 = vsel %vm316, %v301, 0
        %v335 = vsel %vm316, %v303, 0
        %v337 = vsel %vm316, %v305, 0
        %v339 = vsel %vm316, %v307, 0
        %v341 = vsel %vm316, %v309, 0
        %v343 = vsel %vm316, %v311, 0
        %v345 = vsel %vm316, %v313, 0
        %v347 = vsel %vm316, %v315, 0
        %349 = vmatprep.subr.mxu0 0.0
        %350 = vmatpush1.xpose.msra.mxu0 0.0
        %351 = vmatprep.subr.mxu0 0.0
        %352 = vmatpush1.xpose.msra.mxu0 0.0
        %353 = vmatprep.subr.mxu0 0.0
        %354 = vmatpush1.xpose.msra.mxu0 0.0
        %355 = vmatprep.subr.mxu0 0.0
        %356 = vmatpush1.xpose.msra.mxu0 0.0
        %357 = vmatprep.subr.mxu0 0.0
        %358 = vmatpush1.xpose.msra.mxu0 0.0
        %359 = vmatprep.subr.mxu0 0.0
        %360 = vmatpush1.xpose.msra.mxu0 0.0
        %361 = vmatprep.subr.mxu0 0.0
        %362 = vmatpush1.xpose.msra.mxu0 0.0
        %363 = vmatprep.subr.mxu0 0.0
        %364 = vmatpush1.xpose.msra.mxu0 0.0
        %365 = vmatprep.subr.mxu0 0.0
        %366 = vmatpush1.xpose.msra.mxu0 %v347
        %367 = vmatprep.subr.mxu0 0.0
        %368 = vmatpush1.xpose.msra.mxu0 %v345
        %369 = vmatprep.subr.mxu0 0.0
        %370 = vmatpush1.xpose.msra.mxu0 %v343
        %371 = vmatprep.subr.mxu0 0.0
        %372 = vmatpush1.xpose.msra.mxu0 %v341
        %373 = vmatprep.subr.mxu0 0.0
        %374 = vmatpush1.xpose.msra.mxu0 %v339
        %375 = vmatprep.subr.mxu0 0.0
        %376 = vmatpush1.xpose.msra.mxu0 %v337
        %377 = vmatprep.subr.mxu0 0.0
        %378 = vmatpush1.xpose.msra.mxu0 %v335
        %379 = vmatprep.subr.mxu0 0.0
        %380 = vmatpush1.xpose.msra.mxu0 %v333
        %381 = vmatprep.subr.mxu0 0.0
        %382 = vmatpush2.xpose.msra.mxu0 0.0
        %383 = vmatprep.subr.mxu0 0.0
        %384 = vmatpush2.xpose.msra.mxu0 0.0
        %385 = vmatprep.subr.mxu0 0.0
        %386 = vmatpush2.xpose.msra.mxu0 0.0
        %387 = vmatprep.subr.mxu0 0.0
        %388 = vmatpush2.xpose.msra.mxu0 0.0
        %389 = vmatprep.subr.mxu0 0.0
        %390 = vmatpush2.xpose.msra.mxu0 0.0
        %391 = vmatprep.subr.mxu0 0.0
        %392 = vmatpush2.xpose.msra.mxu0 0.0
        %393 = vmatprep.subr.mxu0 0.0
        %394 = vmatpush2.xpose.msra.mxu0 0.0
        %395 = vmatprep.subr.mxu0 0.0
        %396 = vmatpush2.xpose.msra.mxu0 0.0
        %397 = vmatprep.subr.mxu0 0.0
        %398 = vmatpush2.xpose.msra.mxu0 0.0
        %399 = vmatprep.subr.mxu0 0.0
        %400 = vmatpush2.xpose.msra.mxu0 0.0
        %401 = vmatprep.subr.mxu0 0.0
        %402 = vmatpush2.xpose.msra.mxu0 0.0
        %403 = vmatprep.subr.mxu0 0.0
        %404 = vmatpush2.xpose.msra.mxu0 0.0
        %405 = vmatprep.subr.mxu0 0.0
        %406 = vmatpush2.xpose.msra.mxu0 0.0
        %407 = vmatprep.subr.mxu0 0.0
        %408 = vmatpush2.xpose.msra.mxu0 0.0
        %409 = vmatprep.subr.mxu0 0.0
        %410 = vmatpush2.xpose.msra.mxu0 0.0
        %411 = vmatprep.subr.mxu0 0.0
        %412 = vmatpush2.xpose.msra.mxu0 0.0
        %413 = vmatprep.mubr.f32.mxu0 0.0
        %414 = vmatmul.mubr.f32.gmra.mxu0 %v317
        %v415 = vpop.f32.mrf.mxu0
        %v416 = vadd.f32 0.0, %v415
        %v417 = vpop.f32.mrf.mxu0
        %418 = vmatprep.mubr.f32.mxu0 0.0
        %419 = vmatmul.mubr.f32.gmra.mxu0 %v319
        %v420 = vpop.f32.mrf.mxu0
        %v421 = vadd.f32 0.0, %v420
        %v422 = vpop.f32.mrf.mxu0
        %423 = vmatprep.mubr.f32.mxu0 0.0
        %424 = vmatmul.mubr.f32.gmra.mxu0 %v321
        %v425 = vpop.f32.mrf.mxu0
        %v426 = vadd.f32 0.0, %v425
        %v427 = vpop.f32.mrf.mxu0
        %428 = vmatprep.mubr.f32.mxu0 0.0
        %429 = vmatmul.mubr.f32.gmra.mxu0 %v323
        %v430 = vpop.f32.mrf.mxu0
        %v431 = vadd.f32 0.0, %v430
        %v432 = vpop.f32.mrf.mxu0
        %433 = vmatprep.mubr.f32.mxu0 0.0
        %434 = vmatmul.mubr.f32.gmra.mxu0 %v325
        %v435 = vpop.f32.mrf.mxu0
        %v436 = vadd.f32 0.0, %v435
        %v437 = vpop.f32.mrf.mxu0
        %438 = vmatprep.mubr.f32.mxu0 0.0
        %439 = vmatmul.mubr.f32.gmra.mxu0 %v327
        %v440 = vpop.f32.mrf.mxu0
        %v441 = vadd.f32 0.0, %v440
        %v442 = vpop.f32.mrf.mxu0
        %443 = vmatprep.mubr.f32.mxu0 0.0
        %444 = vmatmul.mubr.f32.gmra.mxu0 %v329
        %v445 = vpop.f32.mrf.mxu0
        %v446 = vadd.f32 0.0, %v445
        %v447 = vpop.f32.mrf.mxu0
        %448 = vmatprep.mubr.f32.mxu0 0.0
        %449 = vmatmul.mubr.f32.gmra.mxu0 %v331
        %v450 = vpop.f32.mrf.mxu0
        %v451 = vadd.f32 0.0, %v450
        %v452 = vpop.f32.mrf.mxu0
        %453 = vdwg.mxu0
        %v454 = vmul.f32 %v416, 0.35355338
        %v455 = vmul.f32 %v421, 0.35355338
        %v456 = vmul.f32 %v426, 0.35355338
        %v457 = vmul.f32 %v431, 0.35355338
        %v458 = vmul.f32 %v436, 0.35355338
        %v459 = vmul.f32 %v441, 0.35355338
        %v460 = vmul.f32 %v446, 0.35355338
        %v461 = vmul.f32 %v451, 0.35355338
        %v462 = vsel %vm214, %v454, -inf
        %463 = vmax.xlane.f32.xlu0 %v462
        %v464 = vpop.xlane.xlu0 %463
        %v465 = vsel %vm214, %v455, -inf
        %466 = vmax.xlane.f32.xlu0 %v465
        %v467 = vpop.xlane.xlu0 %466
        %v468 = vsel %vm214, %v456, -inf
        %469 = vmax.xlane.f32.xlu0 %v468
        %v470 = vpop.xlane.xlu0 %469
        %v471 = vsel %vm214, %v457, -inf
        %472 = vmax.xlane.f32.xlu0 %v471
        %v473 = vpop.xlane.xlu0 %472
        %v474 = vsel %vm214, %v458, -inf
        %475 = vmax.xlane.f32.xlu0 %v474
        %v476 = vpop.xlane.xlu0 %475
        %v477 = vsel %vm214, %v459, -inf
        %478 = vmax.xlane.f32.xlu0 %v477
        %v479 = vpop.xlane.xlu0 %478
        %v480 = vsel %vm214, %v460, -inf
        %481 = vmax.xlane.f32.xlu0 %v480
        %v482 = vpop.xlane.xlu0 %481
        %v483 = vsel %vm214, %v461, -inf
        %484 = vmax.xlane.f32.xlu0 %v483
        %v485 = vpop.xlane.xlu0 %484
        %v486 = vsub.f32 %v454, %v464
        %v487 = vsub.f32 %v455, %v467
        %v488 = vsub.f32 %v456, %v470
        %v489 = vsub.f32 %v457, %v473
        %v490 = vsub.f32 %v458, %v476
        %v491 = vsub.f32 %v459, %v479
        %v492 = vsub.f32 %v460, %v482
        %v493 = vsub.f32 %v461, %v485
        %v494 = vmul.f32 %v486, 1.442695
        %v495 = vpow.pop %v494
        %v496 = vmul.f32 %v487, 1.442695
        %v497 = vpow.pop %v496
        %v498 = vmul.f32 %v488, 1.442695
        %v499 = vpow.pop %v498
        %v500 = vmul.f32 %v489, 1.442695
        %v501 = vpow.pop %v500
        %v502 = vmul.f32 %v490, 1.442695
        %v503 = vpow.pop %v502
        %v504 = vmul.f32 %v491, 1.442695
        %v505 = vpow.pop %v504
        %v506 = vmul.f32 %v492, 1.442695
        %v507 = vpow.pop %v506
        %v508 = vmul.f32 %v493, 1.442695
        %v509 = vpow.pop %v508
        %v510 = vsel %vm214, %v495, 0.0
        %511 = vadd.xlane.f32.xlu0 %v510
        %v512 = vpop.xlane.xlu0 %511
        %v513 = vsel %vm214, %v497, 0.0
        %514 = vadd.xlane.f32.xlu0 %v513
        %v515 = vpop.xlane.xlu0 %514
        %v516 = vsel %vm214, %v499, 0.0
        %517 = vadd.xlane.f32.xlu0 %v516
        %v518 = vpop.xlane.xlu0 %517
        %v519 = vsel %vm214, %v501, 0.0
        %520 = vadd.xlane.f32.xlu0 %v519
        %v521 = vpop.xlane.xlu0 %520
        %v522 = vsel %vm214, %v503, 0.0
        %523 = vadd.xlane.f32.xlu0 %v522
        %v524 = vpop.xlane.xlu0 %523
        %v525 = vsel %vm214, %v505, 0.0
        %526 = vadd.xlane.f32.xlu0 %v525
        %v527 = vpop.xlane.xlu0 %526
        %v528 = vsel %vm214, %v507, 0.0
        %529 = vadd.xlane.f32.xlu0 %v528
        %v530 = vpop.xlane.xlu0 %529
        %v531 = vsel %vm214, %v509, 0.0
        %532 = vadd.xlane.f32.xlu0 %v531
        %v533 = vpop.xlane.xlu0 %532
        %v534 = vrcp.pop %v512
        %v535 = vmul.f32 %v495, %v534
        %v536 = vrcp.pop %v515
        %v537 = vmul.f32 %v497, %v536
        %v538 = vrcp.pop %v518
        %v539 = vmul.f32 %v499, %v538
        %v540 = vrcp.pop %v521
        %v541 = vmul.f32 %v501, %v540
        %v542 = vrcp.pop %v524
        %v543 = vmul.f32 %v503, %v542
        %v544 = vrcp.pop %v527
        %v545 = vmul.f32 %v505, %v544
        %v546 = vrcp.pop %v530
        %v547 = vmul.f32 %v507, %v546
        %v548 = vrcp.pop %v533
        %v549 = vmul.f32 %v509, %v548
        %550 = vrot.lane.b32.xlu0 %v262, 112
        %v551 = vpop.permute.xlu0 %550
        %552 = vrot.lane.b32.xlu0 %v265, 112
        %v553 = vpop.permute.xlu0 %552
        %554 = vrot.lane.b32.xlu0 %v270, 112
        %v555 = vpop.permute.xlu0 %554
        %556 = vrot.lane.b32.xlu0 %v273, 112
        %v557 = vpop.permute.xlu0 %556
        %558 = vrot.lane.b32.xlu0 %v278, 112
        %v559 = vpop.permute.xlu0 %558
        %560 = vrot.lane.b32.xlu0 %v281, 112
        %v561 = vpop.permute.xlu0 %560
        %562 = vrot.lane.b32.xlu0 %v286, 112
        %v563 = vpop.permute.xlu0 %562
        %564 = vrot.lane.b32.xlu0 %v289, 112
        %v565 = vpop.permute.xlu0 %564
        %v575 = vsel %vm214, %v535, 0
        %v578 = vsel %vm214, %v537, 0
        %v581 = vsel %vm214, %v539, 0
        %v584 = vsel %vm214, %v541, 0
        %v587 = vsel %vm214, %v543, 0
        %v590 = vsel %vm214, %v545, 0
        %v593 = vsel %vm214, %v547, 0
        %v596 = vsel %vm214, %v549, 0
        %598 = vmatprep.subr.mxu0 0.0
        %599 = vmatpush1.msra.mxu0 0.0
        %600 = vmatprep.subr.mxu0 0.0
        %601 = vmatpush1.msra.mxu0 0.0
        %602 = vmatprep.subr.mxu0 0.0
        %603 = vmatpush1.msra.mxu0 0.0
        %604 = vmatprep.subr.mxu0 0.0
        %605 = vmatpush1.msra.mxu0 0.0
        %606 = vmatprep.subr.mxu0 0.0
        %607 = vmatpush1.msra.mxu0 0.0
        %608 = vmatprep.subr.mxu0 0.0
        %609 = vmatpush1.msra.mxu0 0.0
        %610 = vmatprep.subr.mxu0 0.0
        %611 = vmatpush1.msra.mxu0 0.0
        %612 = vmatprep.subr.mxu0 0.0
        %613 = vmatpush1.msra.mxu0 0.0
        %614 = vmatprep.subr.mxu0 0.0
        %615 = vmatpush1.msra.mxu0 %v565
        %616 = vmatprep.subr.mxu0 0.0
        %617 = vmatpush1.msra.mxu0 %v563
        %618 = vmatprep.subr.mxu0 0.0
        %619 = vmatpush1.msra.mxu0 %v561
        %620 = vmatprep.subr.mxu0 0.0
        %621 = vmatpush1.msra.mxu0 %v559
        %622 = vmatprep.subr.mxu0 0.0
        %623 = vmatpush1.msra.mxu0 %v557
        %624 = vmatprep.subr.mxu0 0.0
        %625 = vmatpush1.msra.mxu0 %v555
        %626 = vmatprep.subr.mxu0 0.0
        %627 = vmatpush1.msra.mxu0 %v553
        %628 = vmatprep.subr.mxu0 0.0
        %629 = vmatpush1.msra.mxu0 %v551
        %630 = vmatprep.subr.mxu0 0.0
        %631 = vmatpush2.msra.mxu0 0.0
        %632 = vmatprep.subr.mxu0 0.0
        %633 = vmatpush2.msra.mxu0 0.0
        %634 = vmatprep.subr.mxu0 0.0
        %635 = vmatpush2.msra.mxu0 0.0
        %636 = vmatprep.subr.mxu0 0.0
        %637 = vmatpush2.msra.mxu0 0.0
        %638 = vmatprep.subr.mxu0 0.0
        %639 = vmatpush2.msra.mxu0 0.0
        %640 = vmatprep.subr.mxu0 0.0
        %641 = vmatpush2.msra.mxu0 0.0
        %642 = vmatprep.subr.mxu0 0.0
        %643 = vmatpush2.msra.mxu0 0.0
        %644 = vmatprep.subr.mxu0 0.0
        %645 = vmatpush2.msra.mxu0 0.0
        %646 = vmatprep.subr.mxu0 0.0
        %647 = vmatpush2.msra.mxu0 0.0
        %648 = vmatprep.subr.mxu0 0.0
        %649 = vmatpush2.msra.mxu0 0.0
        %650 = vmatprep.subr.mxu0 0.0
        %651 = vmatpush2.msra.mxu0 0.0
        %652 = vmatprep.subr.mxu0 0.0
        %653 = vmatpush2.msra.mxu0 0.0
        %654 = vmatprep.subr.mxu0 0.0
        %655 = vmatpush2.msra.mxu0 0.0
        %656 = vmatprep.subr.mxu0 0.0
        %657 = vmatpush2.msra.mxu0 0.0
        %658 = vmatprep.subr.mxu0 0.0
        %659 = vmatpush2.msra.mxu0 0.0
        %660 = vmatprep.subr.mxu0 0.0
        %661 = vmatpush2.msra.mxu0 0.0
        %662 = vmatprep.mubr.f32.mxu0 0.0
        %663 = vmatmul.mubr.f32.gmra.mxu0 %v575
        %v664 = vpop.f32.mrf.mxu0
        %v665 = vadd.f32 0.0, %v664
        %v666 = vpop.f32.mrf.mxu0
        %667 = vmatprep.mubr.f32.mxu0 0.0
        %668 = vmatmul.mubr.f32.gmra.mxu0 %v578
        %v669 = vpop.f32.mrf.mxu0
        %v670 = vadd.f32 0.0, %v669
        %v671 = vpop.f32.mrf.mxu0
        %672 = vmatprep.mubr.f32.mxu0 0.0
        %673 = vmatmul.mubr.f32.gmra.mxu0 %v581
        %v674 = vpop.f32.mrf.mxu0
        %v675 = vadd.f32 0.0, %v674
        %v676 = vpop.f32.mrf.mxu0
        %677 = vmatprep.mubr.f32.mxu0 0.0
        %678 = vmatmul.mubr.f32.gmra.mxu0 %v584
        %v679 = vpop.f32.mrf.mxu0
        %v680 = vadd.f32 0.0, %v679
        %v681 = vpop.f32.mrf.mxu0
        %682 = vmatprep.mubr.f32.mxu0 0.0
        %683 = vmatmul.mubr.f32.gmra.mxu0 %v587
        %v684 = vpop.f32.mrf.mxu0
        %v685 = vadd.f32 0.0, %v684
        %v686 = vpop.f32.mrf.mxu0
        %687 = vmatprep.mubr.f32.mxu0 0.0
        %688 = vmatmul.mubr.f32.gmra.mxu0 %v590
        %v689 = vpop.f32.mrf.mxu0
        %v690 = vadd.f32 0.0, %v689
        %v691 = vpop.f32.mrf.mxu0
        %692 = vmatprep.mubr.f32.mxu0 0.0
        %693 = vmatmul.mubr.f32.gmra.mxu0 %v593
        %v694 = vpop.f32.mrf.mxu0
        %v695 = vadd.f32 0.0, %v694
        %v696 = vpop.f32.mrf.mxu0
        %697 = vmatprep.mubr.f32.mxu0 0.0
        %698 = vmatmul.mubr.f32.gmra.mxu0 %v596
        %v699 = vpop.f32.mrf.mxu0
        %v700 = vadd.f32 0.0, %v699
        %v701 = vpop.f32.mrf.mxu0
        %702 = vdwg.mxu0
        %703 = vxpose.xlu0.b32.start [1/16] %v665, 128
        %704 = vxpose.xlu0.b32.cont [2/16] %v670, 128
        %705 = vxpose.xlu0.b32.cont [3/16] %v675, 128
        %706 = vxpose.xlu0.b32.cont [4/16] %v680, 128
        %707 = vxpose.xlu0.b32.cont [5/16] %v685, 128
        %708 = vxpose.xlu0.b32.cont [6/16] %v690, 128
        %709 = vxpose.xlu0.b32.cont [7/16] %v695, 128
        %710 = vxpose.xlu0.b32.cont [8/16] %v700, 128
        %711 = vxpose.xlu0.b32.cont [9/16] 0.0, 128
        %712 = vxpose.xlu0.b32.cont [10/16] 0.0, 128
        %713 = vxpose.xlu0.b32.cont [11/16] 0.0, 128
        %714 = vxpose.xlu0.b32.cont [12/16] 0.0, 128
        %715 = vxpose.xlu0.b32.cont [13/16] 0.0, 128
        %716 = vxpose.xlu0.b32.cont [14/16] 0.0, 128
        %717 = vxpose.xlu0.b32.cont [15/16] 0.0, 128
        %718 = vxpose.xlu0.b32.end [16/16] 0.0, 128
        %v719 = vpop.trf.xlu0
        %v720 = vpop.trf.xlu0
        %v721 = vpop.trf.xlu0
        %v722 = vpop.trf.xlu0
        %v723 = vpop.trf.xlu0
        %v724 = vpop.trf.xlu0
        %v725 = vpop.trf.xlu0
        %v726 = vpop.trf.xlu0
        %v727 = vpop.trf.xlu0
        %v728 = vpop.trf.xlu0
        %v729 = vpop.trf.xlu0
        %v730 = vpop.trf.xlu0
        %v731 = vpop.trf.xlu0
        %v732 = vpop.trf.xlu0
        %v733 = vpop.trf.xlu0
        %v734 = vpop.trf.xlu0
        %s735 = scalar_lea.vmem %s143, %s159
        %736 = vst.msk [vmem:[%s735] sm:$0xff] %vm214, %v719
      $region33: #{lowmixer_forward.1} parent=27 // loop_footer
        %s158 = sadd.s32 1, %s154
      $region34: #{lowmixer_forward.1} parent=27 // loop_footer_branch
        %153 = sbr.rel target = $region30
      $region35: #{lowmixer_forward.1} parent=27 // loop_exit
        _
      %p737 = scmp.lt.s32.totalorder %s13, 1
      %s738 = scalar_select %p737, %s13, 1
      %s739 = smul.addr %s738, 8
      %s740 = smul.addr %s739, 8
      %s741 = scalar_lea.vmem %s2, %s740
      // Predicated region
      $region36: #{lowmixer_forward.1} parent=27 // pred_check
        %p742 = pneg %p78
      $region37: #{lowmixer_forward.1} parent=27 // pred_check_branch
        %744 = sbr.rel (%p742) target = $region39
      $region38: #{lowmixer_forward.1} parent=27 // pred_region
        _
      $region39: #{lowmixer_forward.1} parent=27 // pred_fallthru
        _
    $region28: #{lowmixer_forward.1} parent=5 // pred_fallthru
      _
    %p745 = scmp.le.s32.totalorder 2, %s8
    // Predicated region
    $region40: #{lowmixer_forward.1} parent=5 // pred_check
      %p746 = pneg %p745
    $region41: #{lowmixer_forward.1} parent=5 // pred_check_branch
      %748 = sbr.rel (%p746) target = $region43
    $region42: #{lowmixer_forward.1} parent=5 // pred_region
      %s749 = ssub.s32 %s8, 2
      // Predicated region
      $region44: #{lowmixer_forward.1} parent=42 // pred_check
        %p750 = pneg %p84
      $region45: #{lowmixer_forward.1} parent=42 // pred_check_branch
        %752 = sbr.rel (%p750) target = $region47
      $region46: #{lowmixer_forward.1} parent=42 // pred_region
        %p753 = scmp.lt.s32.totalorder %s14, 1
        %s754 = scalar_select %p753, %s14, 1
        %s755 = smul.addr %s754, 8
        %s756 = smul.addr %s755, 8
        %s757 = scalar_lea.vmem %s2, %s756
      $region47: #{lowmixer_forward.1} parent=42 // pred_fallthru
        _
    $region43: #{lowmixer_forward.1} parent=5 // pred_fallthru
      _
  $region6: #{lowmixer_forward.1} parent=0 // loop_footer
    %s12 = sadd.s32 1, %s8
  $region7: #{lowmixer_forward.1} parent=0 // loop_footer_branch
    %7 = sbr.rel target = $region3
  $region8: #{lowmixer_forward.1} parent=0 // loop_exit
    _

</llo_original>
